<compile_context>
chip_gen: v7x
topology: tpu7x:2x2x1
jax: 0.10.0
libtpu: 0.0.40
codegen_flags: <defaults>
</compile_context>

<pallas_src>
import jax
import jax.numpy as jnp
from jax.experimental import pallas as pl
from jax.experimental.pallas import tpu as pltpu

_LANE = 128
_MAX_TN = 16 * 1024          # lane-tile cap (raised from 2048 per review)
_TARGET_STEP_LANES = 8192    # target lanes of work per grid step


def _round_up(x, m):
    return ((x + m - 1) // m) * m


def _choose_tiling(b, hw):
    """Pick (tb, tn): batch sub-block and lane (spatial) tile.

    * tn is a multiple of 128, capped at _MAX_TN, and does NOT have to divide
      H*W: ragged tails are handled by Pallas block-boundary masking in-kernel
      (no host-side pad/slice HBM passes, no tn=128 divisibility fallback).
    * When one spatial tile covers the whole image, block over batch so each
      grid step still carries ~_TARGET_STEP_LANES lanes of work.
    * Keep the (parallel) grid at >= 2 steps when possible so both v7x
      TensorCores get work (no-op on single-TC v5e/v6e).
    """
    hw128 = _round_up(hw, _LANE)
    tn = min(hw128, _MAX_TN)
    if tn >= hw128:
        tb = max(1, min(b, _TARGET_STEP_LANES // hw128))
    else:
        tb = 1
    steps = pl.cdiv(b, tb) * pl.cdiv(hw, tn)
    if steps < 2:
        if tb > 1:
            tb = pl.cdiv(tb, 2)
        elif hw128 >= 2 * _LANE:
            tn = _round_up(pl.cdiv(hw128, 2), _LANE)
    return tb, tn


# ----------------------------------------------------------------------------
# Pallas kernels (channels on sublanes, spatial on lanes, f32 accumulation)
#   dual:   y = W2t @ SiLU(W1wt @ xw + W1nt @ xn + b1) + b2
#   single: y = W2t @ SiLU(W1st @ x + b1) + b2          (W1st = W1wt + W1nt)
# Padded lanes (ragged H*W / ragged batch block) compute junk columns that are
# never written back; this is safe because there are no cross-column ops.
# ----------------------------------------------------------------------------
def _dual_stream_kernel(xw_ref, xn_ref, w1w_ref, w1n_ref, b1_ref, w2_ref,
                        b2_ref, o_ref):
    # xw/xn : (TB, C,  TN)  io-dtype, lane-dense spatial tiles
    # w1w/w1n: (CH, C) f32  fusion 1x1 conv weight (pre-transposed, split)
    # b1     : (CH, 1) f32 ; w2: (CO, CH) f32 ; b2: (CO, 1) f32
    # o      : (TB, CO, TN) io-dtype
    w1w = w1w_ref[...]
    w1n = w1n_ref[...]
    b1 = b1_ref[...]
    w2 = w2_ref[...]
    b2 = b2_ref[...]
    for i in range(o_ref.shape[0]):  # static unroll over the batch sub-block
        h = (jnp.dot(w1w, xw_ref[i], preferred_element_type=jnp.float32)
             + jnp.dot(w1n, xn_ref[i], preferred_element_type=jnp.float32)
             + b1)                                   # (CH, TN) f32
        h = h * jax.nn.sigmoid(h)                    # SiLU in f32
        y = jnp.dot(w2, h, preferred_element_type=jnp.float32) + b2
        o_ref[i] = y.astype(o_ref.dtype)


def _single_stream_kernel(x_ref, w1s_ref, b1_ref, w2_ref, b2_ref, o_ref):
    # Duplicated-input path ([x, x]): identical math with the fusion weight
    # pre-summed (W1s = W1w + W1n).  Note this changes f32 summation order vs
    # W1w@x + W1n@x by rounding-level amounts (well inside 1e-4) and halves
    # the input DMA + fusion MXU work.
    w1s = w1s_ref[...]
    b1 = b1_ref[...]
    w2 = w2_ref[...]
    b2 = b2_ref[...]
    for i in range(o_ref.shape[0]):
        h = jnp.dot(w1s, x_ref[i], preferred_element_type=jnp.float32) + b1
        h = h * jax.nn.sigmoid(h)
        y = jnp.dot(w2, h, preferred_element_type=jnp.float32) + b2
        o_ref[i] = y.astype(o_ref.dtype)


# ----------------------------------------------------------------------------
# pallas_call wrapper
# ----------------------------------------------------------------------------
def _pallas_fused(streams, weights, c_out, *, tb, tn):
    """streams: 1 or 2 arrays of shape (B, C, HW); HW need not divide tn."""
    b, c, hw = streams[0].shape
    io_dtype = streams[0].dtype
    grid = (pl.cdiv(b, tb), pl.cdiv(hw, tn))

    stream_spec = pl.BlockSpec((tb, c, tn), lambda bi, ji: (bi, 0, ji))
    out_spec = pl.BlockSpec((tb, c_out, tn), lambda bi, ji: (bi, 0, ji))

    def const_spec(w):
        # Full-array block with a constant index_map -> VMEM-resident, not
        # re-streamed per grid step.
        # TODO(synk): pipeline_mode=pl.Buffered(1) would also drop the unused
        # second weight buffer (pure VMEM hygiene, ~KiB); omitted for safety.
        return pl.BlockSpec(w.shape, lambda bi, ji: (0, 0))

    kernel = _dual_stream_kernel if len(streams) == 2 else _single_stream_kernel

    # Explicit VMEM budget from the per-step footprint (review: keep it well
    # under v7x's 32 MiB default scoped / 64 MiB physical budget).
    io_bytes = streams[0].dtype.itemsize
    c_hid = weights[0].shape[0]
    step_io = (len(streams) * tb * c * tn * io_bytes * 2       # dbl-buffered inputs
               + tb * c_out * tn * io_bytes * 2                # dbl-buffered output
               + 2 * sum(int(w.size) * w.dtype.itemsize for w in weights))
    interm = 4 * c_hid * tn * 4                                # f32 temporaries
    vmem_limit = int(min(32 << 20, max(16 << 20, 2 * step_io + tb * interm)))

    return pl.pallas_call(
        kernel,
        out_shape=jax.ShapeDtypeStruct((b, c_out, hw), io_dtype),
        grid_spec=pl.GridSpec(
            grid=grid,
            in_specs=[stream_spec] * len(streams)
                     + [const_spec(w) for w in weights],
            out_specs=out_spec,
        ),
        compiler_params=pltpu.CompilerParams(
            dimension_semantics=("parallel", "parallel"),
            vmem_limit_bytes=vmem_limit),
    )(*streams, *weights)


# ----------------------------------------------------------------------------
# DualStreamWrapper forward (JAX wrapper around the Pallas kernel)
# ----------------------------------------------------------------------------
class DualStreamWrapperPallas:
    """Mirrors DualStreamWrapper.forward semantics.

    The wrapped synthetic model contains a MultiStream fusion module, so
    `requires_dual_input` is True: a (wide, narrow) pair is consumed directly;
    a single tensor is treated as [x, x] (the PyTorch warning path),
    implemented with a pre-summed fusion weight for identical math at half the
    HBM read traffic.
    """

    def __init__(self, c_in, c_hidden, c_out, key):
        k1, k2, k3, k4 = jax.random.split(key, 4)
        # Canonical (PyTorch-style) parameters, used by the reference.
        self.w1 = (jax.random.normal(k1, (2 * c_in, c_hidden), jnp.float32)
                   * (1.0 / jnp.sqrt(2.0 * c_in)))
        self.b1 = jax.random.normal(k2, (1, c_hidden), jnp.float32) * 0.1
        self.w2 = (jax.random.normal(k3, (c_hidden, c_out), jnp.float32)
                   * (1.0 / jnp.sqrt(float(c_hidden))))
        self.b2 = jax.random.normal(k4, (1, c_out), jnp.float32) * 0.1

        # Kernel-layout parameters: pre-transposed / split (one-time host work).
        # Weights stay f32 (tiny, VMEM-resident); the streams' dtype controls
        # HBM traffic, not the weights'.
        self.w1w_t = jnp.transpose(self.w1[:c_in])        # (CH, C)
        self.w1n_t = jnp.transpose(self.w1[c_in:])        # (CH, C)
        self.w1s_t = self.w1w_t + self.w1n_t              # duplicated-input path
        self.b1_col = jnp.transpose(self.b1)              # (CH, 1)
        self.w2_t = jnp.transpose(self.w2)                # (CO, CH)
        self.b2_col = jnp.transpose(self.b2)              # (CO, 1)

        self.requires_dual_input = True   # model contains a MultiStream module
        self.c_in, self.c_hidden, self.c_out = c_in, c_hidden, c_out

    def __call__(self, x, io_dtype=None):
        if isinstance(x, (list, tuple)):
            if len(x) != 2:
                raise ValueError(
                    f"Unsupported input for dual-stream model: {type(x)}")
            wide, narrow = x
            assert wide.shape == narrow.shape, (
                "dual-stream wide/narrow must share (B, C, H, W); "
                "resize streams upstream")
            streams_nchw = [wide, narrow]
            weights = [self.w1w_t, self.w1n_t, self.b1_col,
                       self.w2_t, self.b2_col]
        else:
            # Single tensor provided to dual-stream model -> [x, x] semantics.
            streams_nchw = [x]
            weights = [self.w1s_t, self.b1_col, self.w2_t, self.b2_col]

        if io_dtype is None:
            # Keep the incoming dtype: feeding bf16 streams halves HBM traffic
            # (compute is f32 regardless).  We never insert a wrapper-side
            # cast on our own since that would itself cost an extra HBM pass.
            io_dtype = streams_nchw[0].dtype

        b, c, hh, ww = streams_nchw[0].shape
        hw = hh * ww
        tb, tn = _choose_tiling(b, hw)

        # Contiguous reshape (free); ragged H*W handled in-kernel via Pallas
        # block-boundary masking (no jnp.pad / output slice HBM round trips).
        streams = [t.astype(io_dtype).reshape(b, c, hw) for t in streams_nchw]

        y = _pallas_fused(streams, weights, self.c_out, tb=tb, tn=tn)
        return y.reshape(b, self.c_out, hh, ww)            # already NCHW


# Pure-JAX reference for verification (canonical concat + matmul formulation).
def _reference(wide, narrow, w1, b1, w2, b2):
    b, c, hh, ww = wide.shape
    co = w2.shape[1]
    to_rows = lambda t: jnp.transpose(
        t.astype(jnp.float32), (0, 2, 3, 1)).reshape(b * hh * ww, c)
    x = jnp.concatenate([to_rows(wide), to_rows(narrow)], axis=-1)
    h = x @ w1 + b1
    h = h * jax.nn.sigmoid(h)
    y = h @ w2 + b2
    return jnp.transpose(y.reshape(b, hh, ww, co), (0, 3, 1, 2))


if __name__ == "__main__":
    key = jax.random.PRNGKey(0)
    k_model, k_wide, k_narrow, k_rag = jax.random.split(key, 4)

    B, C, H, W = 2, 4, 16, 16
    C_HID, C_OUT = 32, 8

    model = DualStreamWrapperPallas(C, C_HID, C_OUT, k_model)

    wide = jax.random.normal(k_wide, (B, C, H, W), jnp.float32)
    narrow = jax.random.normal(k_narrow, (B, C, H, W), jnp.float32)

    # --- f32 I/O path: dual-stream and single-tensor ([x, x]) semantics ----
    out_dual = jax.block_until_ready(model([wide, narrow]))
    out_single = jax.block_until_ready(model(wide))

    ref_dual = _reference(wide, narrow, model.w1, model.b1, model.w2, model.b2)
    ref_single = _reference(wide, wide, model.w1, model.b1, model.w2, model.b2)

    assert out_dual.shape == (B, C_OUT, H, W)
    assert out_single.shape == (B, C_OUT, H, W)
    assert jnp.allclose(out_dual, ref_dual, atol=1e-4, rtol=1e-4)
    assert jnp.allclose(out_single, ref_single, atol=1e-4, rtol=1e-4)

    # --- bf16 I/O path (halved HBM traffic; f32 accumulation in-kernel) ----
    wide_bf = wide.astype(jnp.bfloat16)
    narrow_bf = narrow.astype(jnp.bfloat16)
    out_bf = jax.block_until_ready(model([wide_bf, narrow_bf]))
    ref_bf = _reference(wide_bf, narrow_bf,
                        model.w1, model.b1, model.w2, model.b2)
    assert out_bf.dtype == jnp.bfloat16
    assert jnp.allclose(out_bf.astype(jnp.float32), ref_bf,
                        atol=5e-2, rtol=5e-2)

    # --- ragged H*W (not a multiple of 128): in-kernel boundary masking ----
    Hr, Wr = 13, 11
    kr1, kr2 = jax.random.split(k_rag)
    wr = jax.random.normal(kr1, (1, C, Hr, Wr), jnp.float32)
    nr = jax.random.normal(kr2, (1, C, Hr, Wr), jnp.float32)
    out_r = jax.block_until_ready(model([wr, nr]))
    ref_r = _reference(wr, nr, model.w1, model.b1, model.w2, model.b2)
    assert out_r.shape == (1, C_OUT, Hr, Wr)
    assert jnp.allclose(out_r, ref_r, atol=1e-4, rtol=1e-4)

    print("KERNEL_OK")
</pallas_src>

<mosaic_0001>
module attributes {stable_mosaic.version = 11 : i64} {
  func.func @_dual_stream_kernel(%arg0: i32, %arg1: i32, %arg2: memref<1x4x256xf32, #tpu.memory_space<vmem>>, %arg3: memref<1x4x256xf32, #tpu.memory_space<vmem>>, %arg4: memref<32x4xf32, #tpu.memory_space<vmem>>, %arg5: memref<32x4xf32, #tpu.memory_space<vmem>>, %arg6: memref<32x1xf32, #tpu.memory_space<vmem>>, %arg7: memref<8x32xf32, #tpu.memory_space<vmem>>, %arg8: memref<8x1xf32, #tpu.memory_space<vmem>>, %arg9: memref<1x8x256xf32, #tpu.memory_space<vmem>>) attributes {dimension_semantics = [#tpu.dimension_semantics<parallel>, #tpu.dimension_semantics<parallel>], iteration_bounds = array<i64: 2, 1>, scalar_prefetch = 0 : i64, scratch_operands = 0 : i64, tpu.core_type = #tpu.core_type<tc>, window_params = [{transform_indices = @transform_0, window_bounds = array<i64: 1, 4, 256>}, {transform_indices = @transform_1, window_bounds = array<i64: 1, 4, 256>}, {pipeline_mode = #tpu.pipeline_mode<synchronous>, transform_indices = @transform_2, window_bounds = array<i64: 32, 4>}, {pipeline_mode = #tpu.pipeline_mode<synchronous>, transform_indices = @transform_3, window_bounds = array<i64: 32, 4>}, {pipeline_mode = #tpu.pipeline_mode<synchronous>, transform_indices = @transform_4, window_bounds = array<i64: 32, 1>}, {pipeline_mode = #tpu.pipeline_mode<synchronous>, transform_indices = @transform_5, window_bounds = array<i64: 8, 32>}, {pipeline_mode = #tpu.pipeline_mode<synchronous>, transform_indices = @transform_6, window_bounds = array<i64: 8, 1>}, {transform_indices = @transform_7, window_bounds = array<i64: 1, 8, 256>}]} {
    %c0 = arith.constant 0 : index
    %c0_0 = arith.constant 0 : index
    %0 = vector.load %arg4[%c0, %c0_0] : memref<32x4xf32, #tpu.memory_space<vmem>>, vector<32x4xf32>
    %c0_1 = arith.constant 0 : index
    %c0_2 = arith.constant 0 : index
    %1 = vector.load %arg5[%c0_1, %c0_2] : memref<32x4xf32, #tpu.memory_space<vmem>>, vector<32x4xf32>
    %c0_3 = arith.constant 0 : index
    %c0_4 = arith.constant 0 : index
    %2 = vector.load %arg6[%c0_3, %c0_4] : memref<32x1xf32, #tpu.memory_space<vmem>>, vector<32x1xf32>
    %c0_5 = arith.constant 0 : index
    %c0_6 = arith.constant 0 : index
    %3 = vector.load %arg7[%c0_5, %c0_6] : memref<8x32xf32, #tpu.memory_space<vmem>>, vector<8x32xf32>
    %c0_7 = arith.constant 0 : index
    %c0_8 = arith.constant 0 : index
    %4 = vector.load %arg8[%c0_7, %c0_8] : memref<8x1xf32, #tpu.memory_space<vmem>>, vector<8x1xf32>
    %c0_9 = arith.constant 0 : index
    %c0_10 = arith.constant 0 : index
    %c0_11 = arith.constant 0 : index
    %5 = vector.load %arg2[%c0_9, %c0_10, %c0_11] : memref<1x4x256xf32, #tpu.memory_space<vmem>>, vector<1x4x256xf32>
    %6 = vector.shape_cast %5 : vector<1x4x256xf32> to vector<4x256xf32>
    %cst = arith.constant dense<0.000000e+00> : vector<32x256xf32>
    %7 = tpu.matmul %0, %6, %cst {dimension_numbers = #tpu.dot_dimension_numbers<[1], [0], [0], [1], [0, 0, 1, 1], [], []>} : vector<32x4xf32>, vector<4x256xf32>, vector<32x256xf32> -> vector<32x256xf32>
    %c0_12 = arith.constant 0 : index
    %c0_13 = arith.constant 0 : index
    %c0_14 = arith.constant 0 : index
    %8 = vector.load %arg3[%c0_12, %c0_13, %c0_14] : memref<1x4x256xf32, #tpu.memory_space<vmem>>, vector<1x4x256xf32>
    %9 = vector.shape_cast %8 : vector<1x4x256xf32> to vector<4x256xf32>
    %cst_15 = arith.constant dense<0.000000e+00> : vector<32x256xf32>
    %10 = tpu.matmul %1, %9, %cst_15 {dimension_numbers = #tpu.dot_dimension_numbers<[1], [0], [0], [1], [0, 0, 1, 1], [], []>} : vector<32x4xf32>, vector<4x256xf32>, vector<32x256xf32> -> vector<32x256xf32>
    %11 = arith.addf %7, %10 : vector<32x256xf32>
    %12 = vector.broadcast %2 : vector<32x1xf32> to vector<32x256xf32>
    %13 = arith.addf %11, %12 : vector<32x256xf32>
    %14 = arith.negf %13 : vector<32x256xf32>
    %15 = math.exp %14 : vector<32x256xf32>
    %cst_16 = arith.constant 1.000000e+00 : f32
    %16 = vector.broadcast %cst_16 : f32 to vector<32x256xf32>
    %17 = arith.addf %16, %15 : vector<32x256xf32>
    %18 = arith.divf %16, %17 : vector<32x256xf32>
    %19 = arith.mulf %13, %18 : vector<32x256xf32>
    %cst_17 = arith.constant dense<0.000000e+00> : vector<8x256xf32>
    %20 = tpu.matmul %3, %19, %cst_17 {dimension_numbers = #tpu.dot_dimension_numbers<[1], [0], [0], [1], [0, 0, 1, 1], [], []>} : vector<8x32xf32>, vector<32x256xf32>, vector<8x256xf32> -> vector<8x256xf32>
    %21 = vector.broadcast %4 : vector<8x1xf32> to vector<8x256xf32>
    %22 = arith.addf %20, %21 : vector<8x256xf32>
    %c0_18 = arith.constant 0 : index
    %c0_19 = arith.constant 0 : index
    %c0_20 = arith.constant 0 : index
    %23 = vector.load %arg9[%c0_18, %c0_19, %c0_20] : memref<1x8x256xf32, #tpu.memory_space<vmem>>, vector<1x8x256xf32>
    %24 = vector.shape_cast %23 : vector<1x8x256xf32> to vector<8x256xf32>
    %25 = vector.shape_cast %22 : vector<8x256xf32> to vector<1x8x256xf32>
    tpu.vector_store %arg9[%c0_18, %c0_19, %c0_20], %25 {strides = array<i32>} : memref<1x8x256xf32, #tpu.memory_space<vmem>>, vector<1x8x256xf32>,
    return
  }
  func.func @transform_0(%arg0: i32, %arg1: i32) -> (i32, i32, i32) {
    %c0_i32 = arith.constant 0 : i32
    %c0_i32_0 = arith.constant 0 : i32
    return %arg0, %c0_i32, %arg1 : i32, i32, i32
  }
  func.func @transform_1(%arg0: i32, %arg1: i32) -> (i32, i32, i32) {
    %c0_i32 = arith.constant 0 : i32
    %c0_i32_0 = arith.constant 0 : i32
    return %arg0, %c0_i32, %arg1 : i32, i32, i32
  }
  func.func @transform_2(%arg0: i32, %arg1: i32) -> (i32, i32) {
    %c0_i32 = arith.constant 0 : i32
    %c0_i32_0 = arith.constant 0 : i32
    %c0_i32_1 = arith.constant 0 : i32
    return %c0_i32, %c0_i32_0 : i32, i32
  }
  func.func @transform_3(%arg0: i32, %arg1: i32) -> (i32, i32) {
    %c0_i32 = arith.constant 0 : i32
    %c0_i32_0 = arith.constant 0 : i32
    %c0_i32_1 = arith.constant 0 : i32
    return %c0_i32, %c0_i32_0 : i32, i32
  }
  func.func @transform_4(%arg0: i32, %arg1: i32) -> (i32, i32) {
    %c0_i32 = arith.constant 0 : i32
    %c0_i32_0 = arith.constant 0 : i32
    %c0_i32_1 = arith.constant 0 : i32
    return %c0_i32, %c0_i32_0 : i32, i32
  }
  func.func @transform_5(%arg0: i32, %arg1: i32) -> (i32, i32) {
    %c0_i32 = arith.constant 0 : i32
    %c0_i32_0 = arith.constant 0 : i32
    %c0_i32_1 = arith.constant 0 : i32
    return %c0_i32, %c0_i32_0 : i32, i32
  }
  func.func @transform_6(%arg0: i32, %arg1: i32) -> (i32, i32) {
    %c0_i32 = arith.constant 0 : i32
    %c0_i32_0 = arith.constant 0 : i32
    %c0_i32_1 = arith.constant 0 : i32
    return %c0_i32, %c0_i32_0 : i32, i32
  }
  func.func @transform_7(%arg0: i32, %arg1: i32) -> (i32, i32, i32) {
    %c0_i32 = arith.constant 0 : i32
    %c0_i32_0 = arith.constant 0 : i32
    return %arg0, %c0_i32, %arg1 : i32, i32, i32
  }
}

</mosaic_0001>

<llo_original>
// kernel: tpu_custom_call.1
$region0: #{tpu_custom_call.1}
  #allocation0 [shape = 'u32[]', space=smem, size = 0x4, offset = 0x4, fixed_abs, tag = 'smem constant byte address 0x4 - core index']
  #allocation1 [shape = 'u32[144,128]{1,0:T(1,128)}', space=vmem, size = 0x12000, scoped, tag = 'internal scratch']
  %s0 = inlined_call_operand.vmem [shape: f32[2,4,256], index: 0, kind: input, shape index: {}]
  %s1 = inlined_call_operand.vmem [shape: f32[2,4,256], index: 1, kind: input, shape index: {}]
  %s2 = inlined_call_operand.vmem [shape: f32[32,4], index: 2, kind: input, shape index: {}]
  %s3 = inlined_call_operand.vmem [shape: f32[32,4], index: 3, kind: input, shape index: {}]
  %s4 = inlined_call_operand.vmem [shape: f32[32,1], index: 4, kind: input, shape index: {}]
  %s5 = inlined_call_operand.vmem [shape: f32[8,32], index: 5, kind: input, shape index: {}]
  %s6 = inlined_call_operand.vmem [shape: f32[8,1], index: 6, kind: input, shape index: {}]
  %s7 = inlined_call_operand.hbm [shape: f32[2,8,256], index: 7, kind: output, shape index: {}]
  %s8 = sld [smem:[#allocation0]]
  $region61: #{tpu_custom_call.1} parent=0
    _
  %s10 = ssub.s32 1, %s8
  %s11 = scalar_select 0, %s10, %s8
  $region1: #{tpu_custom_call.1} parent=0
    #allocation2 [shape = 'u8[16384]{0}', space=vmem, size = 0x4000, scoped, tag = 'output window, operand 0']
    #allocation3 [shape = 's32[2]{0}', space=sflag, size = 0x8, scoped, tag = 'scoped memory for tpu_custom_call.1']
    %12 = vsyncpa [#allocation3], 0
    %s13 = scalar_lea.sflag [#allocation3], 1
    %14 = vsyncpa %s13, 0
    loop: start=0, step=1, limit=4
    $region2: #{tpu_custom_call.1} parent=1 // loop_pre_header
      _
    $region3: #{tpu_custom_call.1} parent=1 // loop_header
      %s16 = sphi 0, %s20
      %p17 = scmp.ge.s32.totalorder %s16, 4
      %s23 = sphi 0, %s35
      %s24 = sphi 0, %s31
      %s25 = sphi 0, %s23
      %s26 = sphi 0, %s24
      %s27 = sphi 0, %s25
      %s28 = sphi 0, %s26
      %s40 = sphi 0, %s42
      %s43 = sphi 0, %s40
      %s44 = sphi 0, %s43
      %s60 = sphi 0, %s44
      %s68 = sphi 0, %s70
      %s71 = sphi 0, %s68
      %s72 = sphi 0, %s71
      %s88 = sphi 0, %s72
      %s92 = sphi 0, %s92
      %s94 = sphi 0, %s92
      %s95 = sphi 0, %s94
      %s109 = sphi 0, %s95
      %s113 = sphi 0, %s113
      %s115 = sphi 0, %s113
      %s116 = sphi 0, %s115
      %s130 = sphi 0, %s116
      %s134 = sphi 0, %s134
      %s136 = sphi 0, %s134
      %s137 = sphi 0, %s136
      %s151 = sphi 0, %s137
      %s155 = sphi 0, %s155
      %s157 = sphi 0, %s155
      %s158 = sphi 0, %s157
      %s172 = sphi 0, %s158
      %s176 = sphi 0, %s176
      %s178 = sphi 0, %s176
      %s179 = sphi 0, %s178
      %s193 = sphi 0, %s179
      %s201 = sphi 0, %s203
      %s204 = sphi 0, %s201
      %s205 = sphi 0, %s204
      %s221 = sphi 0, %s205
    $region4: #{tpu_custom_call.1} parent=1 // loop_header_branch
      %19 = sbr.rel (%p17) target = $region8
    $region5: #{tpu_custom_call.1} parent=1 // loop_body
      %s21 = ssub.s32 %s16, 1
      %s22 = ssub.s32 %s16, 2
      %s29 = sadd.s32 1, %s24
      %p30 = scmp.ge.s32.totalorder %s29, 1
      %s31 = scalar_select %p30, 0, %s29
      %s32 = sadd.s32 1, %s23
      %s33 = scalar_select %p30, %s32, %s23
      %p34 = scmp.ge.s32.totalorder %s33, 2
      %s35 = scalar_select %p34, 0, %s33
      %s36 = ssub.s32 %s23, %s35
      %s37 = ssub.s32 %s24, %s31
      %s38 = sor.u32 %s36, %s37
      %p39 = scmp.eq.s32.totalorder %s38, 0
      %s41 = sadd.s32 %s40, 1
      %s42 = scalar_select %p39, %s40, %s41
      %p45 = pneg %p39
      %p46 = scmp.eq.s32.totalorder %s16, 1
      %p47 = por %p45, %p46
      %p48 = scmp.ne.s32.totalorder %s40, %s43
      %p49 = scmp.eq.s32.totalorder %s16, 0
      %p50 = por %p48, %p49
      %p51 = scmp.ne.s32.totalorder %s40, %s43
      %p52 = scmp.eq.s32.totalorder %s21, 1
      %p53 = por %p51, %p52
      %p54 = scmp.ne.s32.totalorder %s43, %s44
      %p55 = scmp.eq.s32.totalorder %s21, 0
      %p56 = por %p54, %p55
      %p57 = scmp.ne.s32.totalorder %s43, %s44
      %p58 = scmp.eq.s32.totalorder %s22, 1
      %p59 = por %p57, %p58
      %p61 = scmp.ne.s32.totalorder %s44, %s60
      %p62 = scmp.eq.s32.totalorder %s22, 0
      %p63 = por %p61, %p62
      %s64 = ssub.s32 %s23, %s35
      %s65 = ssub.s32 %s24, %s31
      %s66 = sor.u32 %s64, %s65
      %p67 = scmp.eq.s32.totalorder %s66, 0
      %s69 = sadd.s32 %s68, 1
      %s70 = scalar_select %p67, %s68, %s69
      %p73 = pneg %p67
      %p74 = scmp.eq.s32.totalorder %s16, 1
      %p75 = por %p73, %p74
      %p76 = scmp.ne.s32.totalorder %s68, %s71
      %p77 = scmp.eq.s32.totalorder %s16, 0
      %p78 = por %p76, %p77
      %p79 = scmp.ne.s32.totalorder %s68, %s71
      %p80 = scmp.eq.s32.totalorder %s21, 1
      %p81 = por %p79, %p80
      %p82 = scmp.ne.s32.totalorder %s71, %s72
      %p83 = scmp.eq.s32.totalorder %s21, 0
      %p84 = por %p82, %p83
      %p85 = scmp.ne.s32.totalorder %s71, %s72
      %p86 = scmp.eq.s32.totalorder %s22, 1
      %p87 = por %p85, %p86
      %p89 = scmp.ne.s32.totalorder %s72, %s88
      %p90 = scmp.eq.s32.totalorder %s22, 0
      %p91 = por %p89, %p90
      %s93 = sadd.s32 %s92, 1
      %p96 = scmp.eq.s32.totalorder %s16, 1
      %p97 = scmp.ne.s32.totalorder %s92, %s94
      %p98 = scmp.eq.s32.totalorder %s16, 0
      %p99 = por %p97, %p98
      %p100 = scmp.ne.s32.totalorder %s92, %s94
      %p101 = scmp.eq.s32.totalorder %s21, 1
      %p102 = por %p100, %p101
      %p103 = scmp.ne.s32.totalorder %s94, %s95
      %p104 = scmp.eq.s32.totalorder %s21, 0
      %p105 = por %p103, %p104
      %p106 = scmp.ne.s32.totalorder %s94, %s95
      %p107 = scmp.eq.s32.totalorder %s22, 1
      %p108 = por %p106, %p107
      %p110 = scmp.ne.s32.totalorder %s95, %s109
      %p111 = scmp.eq.s32.totalorder %s22, 0
      %p112 = por %p110, %p111
      %s114 = sadd.s32 %s113, 1
      %p117 = scmp.eq.s32.totalorder %s16, 1
      %p118 = scmp.ne.s32.totalorder %s113, %s115
      %p119 = scmp.eq.s32.totalorder %s16, 0
      %p120 = por %p118, %p119
      %p121 = scmp.ne.s32.totalorder %s113, %s115
      %p122 = scmp.eq.s32.totalorder %s21, 1
      %p123 = por %p121, %p122
      %p124 = scmp.ne.s32.totalorder %s115, %s116
      %p125 = scmp.eq.s32.totalorder %s21, 0
      %p126 = por %p124, %p125
      %p127 = scmp.ne.s32.totalorder %s115, %s116
      %p128 = scmp.eq.s32.totalorder %s22, 1
      %p129 = por %p127, %p128
      %p131 = scmp.ne.s32.totalorder %s116, %s130
      %p132 = scmp.eq.s32.totalorder %s22, 0
      %p133 = por %p131, %p132
      %s135 = sadd.s32 %s134, 1
      %p138 = scmp.eq.s32.totalorder %s16, 1
      %p139 = scmp.ne.s32.totalorder %s134, %s136
      %p140 = scmp.eq.s32.totalorder %s16, 0
      %p141 = por %p139, %p140
      %p142 = scmp.ne.s32.totalorder %s134, %s136
      %p143 = scmp.eq.s32.totalorder %s21, 1
      %p144 = por %p142, %p143
      %p145 = scmp.ne.s32.totalorder %s136, %s137
      %p146 = scmp.eq.s32.totalorder %s21, 0
      %p147 = por %p145, %p146
      %p148 = scmp.ne.s32.totalorder %s136, %s137
      %p149 = scmp.eq.s32.totalorder %s22, 1
      %p150 = por %p148, %p149
      %p152 = scmp.ne.s32.totalorder %s137, %s151
      %p153 = scmp.eq.s32.totalorder %s22, 0
      %p154 = por %p152, %p153
      %s156 = sadd.s32 %s155, 1
      %p159 = scmp.eq.s32.totalorder %s16, 1
      %p160 = scmp.ne.s32.totalorder %s155, %s157
      %p161 = scmp.eq.s32.totalorder %s16, 0
      %p162 = por %p160, %p161
      %p163 = scmp.ne.s32.totalorder %s155, %s157
      %p164 = scmp.eq.s32.totalorder %s21, 1
      %p165 = por %p163, %p164
      %p166 = scmp.ne.s32.totalorder %s157, %s158
      %p167 = scmp.eq.s32.totalorder %s21, 0
      %p168 = por %p166, %p167
      %p169 = scmp.ne.s32.totalorder %s157, %s158
      %p170 = scmp.eq.s32.totalorder %s22, 1
      %p171 = por %p169, %p170
      %p173 = scmp.ne.s32.totalorder %s158, %s172
      %p174 = scmp.eq.s32.totalorder %s22, 0
      %p175 = por %p173, %p174
      %s177 = sadd.s32 %s176, 1
      %p180 = scmp.eq.s32.totalorder %s16, 1
      %p181 = scmp.ne.s32.totalorder %s176, %s178
      %p182 = scmp.eq.s32.totalorder %s16, 0
      %p183 = por %p181, %p182
      %p184 = scmp.ne.s32.totalorder %s176, %s178
      %p185 = scmp.eq.s32.totalorder %s21, 1
      %p186 = por %p184, %p185
      %p187 = scmp.ne.s32.totalorder %s178, %s179
      %p188 = scmp.eq.s32.totalorder %s21, 0
      %p189 = por %p187, %p188
      %p190 = scmp.ne.s32.totalorder %s178, %s179
      %p191 = scmp.eq.s32.totalorder %s22, 1
      %p192 = por %p190, %p191
      %p194 = scmp.ne.s32.totalorder %s179, %s193
      %p195 = scmp.eq.s32.totalorder %s22, 0
      %p196 = por %p194, %p195
      %s197 = ssub.s32 %s23, %s35
      %s198 = ssub.s32 %s24, %s31
      %s199 = sor.u32 %s197, %s198
      %p200 = scmp.eq.s32.totalorder %s199, 0
      %s202 = sadd.s32 %s201, 1
      %s203 = scalar_select %p200, %s201, %s202
      %p206 = pneg %p200
      %p207 = scmp.eq.s32.totalorder %s16, 1
      %p208 = por %p206, %p207
      %p209 = scmp.ne.s32.totalorder %s201, %s204
      %p210 = scmp.eq.s32.totalorder %s16, 0
      %p211 = por %p209, %p210
      %p212 = scmp.ne.s32.totalorder %s201, %s204
      %p213 = scmp.eq.s32.totalorder %s21, 1
      %p214 = por %p212, %p213
      %p215 = scmp.ne.s32.totalorder %s204, %s205
      %p216 = scmp.eq.s32.totalorder %s21, 0
      %p217 = por %p215, %p216
      %p218 = scmp.ne.s32.totalorder %s204, %s205
      %p219 = scmp.eq.s32.totalorder %s22, 1
      %p220 = por %p218, %p219
      %p222 = scmp.ne.s32.totalorder %s205, %s221
      %p223 = scmp.eq.s32.totalorder %s22, 0
      %p224 = por %p222, %p223
      %p225 = scmp.le.s32.totalorder 1, %s16
      %p226 = scmp.lt.s32.totalorder %s16, 3
      %p227 = pnand %p225, %p226
      %p228 = pneg %p227
      // Predicated region
      $region9: #{tpu_custom_call.1} parent=5 // pred_check
        _
      $region10: #{tpu_custom_call.1} parent=5 // pred_check_branch
        %230 = sbr.rel (%p227) target = $region12
      $region11: #{tpu_custom_call.1} parent=5 // pred_region
        %s231 = ssub.s32 %s16, 1
        // Predicated region
        $region13: #{tpu_custom_call.1} parent=11 // pred_check
          %p232 = pneg %p105
        $region14: #{tpu_custom_call.1} parent=11 // pred_check_branch
          %234 = sbr.rel (%p232) target = $region16
        $region15: #{tpu_custom_call.1} parent=11 // pred_region
          _
        $region16: #{tpu_custom_call.1} parent=11 // pred_fallthru
          _
        // Predicated region
        $region17: #{tpu_custom_call.1} parent=11 // pred_check
          %p235 = pneg %p126
        $region18: #{tpu_custom_call.1} parent=11 // pred_check_branch
          %237 = sbr.rel (%p235) target = $region20
        $region19: #{tpu_custom_call.1} parent=11 // pred_region
          _
        $region20: #{tpu_custom_call.1} parent=11 // pred_fallthru
          _
        // Predicated region
        $region21: #{tpu_custom_call.1} parent=11 // pred_check
          %p238 = pneg %p147
        $region22: #{tpu_custom_call.1} parent=11 // pred_check_branch
          %240 = sbr.rel (%p238) target = $region24
        $region23: #{tpu_custom_call.1} parent=11 // pred_region
          _
        $region24: #{tpu_custom_call.1} parent=11 // pred_fallthru
          _
        // Predicated region
        $region25: #{tpu_custom_call.1} parent=11 // pred_check
          %p241 = pneg %p168
        $region26: #{tpu_custom_call.1} parent=11 // pred_check_branch
          %243 = sbr.rel (%p241) target = $region28
        $region27: #{tpu_custom_call.1} parent=11 // pred_region
          _
        $region28: #{tpu_custom_call.1} parent=11 // pred_fallthru
          _
        // Predicated region
        $region29: #{tpu_custom_call.1} parent=11 // pred_check
          %p244 = pneg %p189
        $region30: #{tpu_custom_call.1} parent=11 // pred_check_branch
          %246 = sbr.rel (%p244) target = $region32
        $region31: #{tpu_custom_call.1} parent=11 // pred_region
          _
        $region32: #{tpu_custom_call.1} parent=11 // pred_fallthru
          _
      $region12: #{tpu_custom_call.1} parent=5 // pred_fallthru
        _
      %p247 = scmp.lt.s32.totalorder %s16, 2
      // Predicated region
      $region33: #{tpu_custom_call.1} parent=5 // pred_check
        %p248 = pneg %p247
      $region34: #{tpu_custom_call.1} parent=5 // pred_check_branch
        %250 = sbr.rel (%p248) target = $region36
      $region35: #{tpu_custom_call.1} parent=5 // pred_region
        // Predicated region
        $region37: #{tpu_custom_call.1} parent=35 // pred_check
          %p251 = pneg %p50
        $region38: #{tpu_custom_call.1} parent=35 // pred_check_branch
          %253 = sbr.rel (%p251) target = $region40
        $region39: #{tpu_custom_call.1} parent=35 // pred_region
          %s254 = smul.u32 2, %s24
          %p255 = scmp.lt.s32.totalorder %s23, 1
          %s256 = scalar_select %p255, %s23, 1
          %p257 = scmp.lt.s32.totalorder %s254, 1
          %s258 = scalar_select %p257, %s254, 1
          %s259 = smul.addr %s256, 2
          %s260 = sadd.s32 %s258, %s259
          %s261 = smul.addr %s260, 4
          %s262 = scalar_lea.vmem %s0, %s261
          %s263 = smul.u32 2, %s24
        $region40: #{tpu_custom_call.1} parent=35 // pred_fallthru
          _
        // Predicated region
        $region41: #{tpu_custom_call.1} parent=35 // pred_check
          %p264 = pneg %p78
        $region42: #{tpu_custom_call.1} parent=35 // pred_check_branch
          %266 = sbr.rel (%p264) target = $region44
        $region43: #{tpu_custom_call.1} parent=35 // pred_region
          %s267 = smul.u32 2, %s24
          %p268 = scmp.lt.s32.totalorder %s23, 1
          %s269 = scalar_select %p268, %s23, 1
          %p270 = scmp.lt.s32.totalorder %s267, 1
          %s271 = scalar_select %p270, %s267, 1
          %s272 = smul.addr %s269, 2
          %s273 = sadd.s32 %s271, %s272
          %s274 = smul.addr %s273, 4
          %s275 = scalar_lea.vmem %s1, %s274
          %s276 = smul.u32 2, %s24
        $region44: #{tpu_custom_call.1} parent=35 // pred_fallthru
          _
      $region36: #{tpu_custom_call.1} parent=5 // pred_fallthru
        _
      %p277 = scmp.le.s32.totalorder 1, %s16
      %p278 = scmp.lt.s32.totalorder %s16, 3
      %p279 = pnand %p277, %p278
      %p280 = pneg %p279
      // Predicated region
      $region45: #{tpu_custom_call.1} parent=5 // pred_check
        _
      $region46: #{tpu_custom_call.1} parent=5 // pred_check_branch
        %282 = sbr.rel (%p279) target = $region48
      $region47: #{tpu_custom_call.1} parent=5 // pred_region
        %s283 = ssub.s32 %s16, 1
        %s284 = smul.u32 2, %s26
        %p285 = scmp.lt.s32.totalorder %s25, 1
        %s286 = scalar_select %p285, %s25, 1
        %p287 = scmp.lt.s32.totalorder %s284, 1
        %s288 = scalar_select %p287, %s284, 1
        %s289 = smul.addr %s286, 2
        %s290 = sadd.s32 %s288, %s289
        %s291 = smul.addr %s290, 4
        %s292 = scalar_lea.vmem %s0, %s291
        %p293 = pneg %p56
        %p294 = pneg %p53
        %s295 = smul.u32 2, %s26
        %p296 = scmp.lt.s32.totalorder %s25, 1
        %s297 = scalar_select %p296, %s25, 1
        %p298 = scmp.lt.s32.totalorder %s295, 1
        %s299 = scalar_select %p298, %s295, 1
        %s300 = smul.addr %s297, 2
        %s301 = sadd.s32 %s299, %s300
        %s302 = smul.addr %s301, 4
        %s303 = scalar_lea.vmem %s1, %s302
        %p304 = pneg %p84
        %p305 = pneg %p81
        %p306 = pneg %p105
        %p307 = pneg %p102
        %p308 = pneg %p126
        %p309 = pneg %p123
        %p310 = pneg %p147
        %p311 = pneg %p144
        %p312 = pneg %p168
        %p313 = pneg %p165
        %p314 = pneg %p189
        %p315 = pneg %p186
        %p316 = pneg %p217
        %p317 = pneg %p214
        %s318 = sand.u32 %s204, 1
        %s319 = scalar_lea.sflag [#allocation3], %s318
        %s320 = sand.u32 %s204, 1
        %s321 = smul.addr %s320, 16
        %s322 = scalar_lea.vmem [#allocation2], %s321
        %s323 = smul.u32 2, %s26
        %p324 = scmp.lt.s32.totalorder %s25, 1
        %s325 = scalar_select %p324, %s25, 1
        %p326 = scmp.lt.s32.totalorder %s323, 1
        %s327 = scalar_select %p326, %s323, 1
        %s328 = smul.addr %s325, 2
        %s329 = sadd.s32 %s327, %s328
        %s330 = smul.addr %s329, 4
        %s331 = scalar_lea.vmem %s0, %s330
        %s332 = smul.u32 2, %s26
        %s333 = smul.u32 2, %s26
        %p334 = scmp.lt.s32.totalorder %s25, 1
        %s335 = scalar_select %p334, %s25, 1
        %p336 = scmp.lt.s32.totalorder %s333, 1
        %s337 = scalar_select %p336, %s333, 1
        %s338 = smul.addr %s335, 2
        %s339 = sadd.s32 %s337, %s338
        %s340 = smul.addr %s339, 4
        %s341 = scalar_lea.vmem %s1, %s340
        %s342 = smul.u32 2, %s26
        %s343 = smul.u32 2, %s26
        %v344 = vld [vmem:[%s2] sm:$0xff]
        %v345 = vld [vmem:[%s2 + $0x8] sm:$0xff]
        %v346 = vld [vmem:[%s2 + $0x10] sm:$0xff]
        %v347 = vld [vmem:[%s2 + $0x18] sm:$0xff]
        %v348 = vld [vmem:[%s3] sm:$0xff]
        %v349 = vld [vmem:[%s3 + $0x8] sm:$0xff]
        %v350 = vld [vmem:[%s3 + $0x10] sm:$0xff]
        %v351 = vld [vmem:[%s3 + $0x18] sm:$0xff]
        %v352 = vld [vmem:[%s4] sm:$0xff]
        %v353 = vld [vmem:[%s4 + $0x8] sm:$0xff]
        %v354 = vld [vmem:[%s4 + $0x10] sm:$0xff]
        %v355 = vld [vmem:[%s4 + $0x18] sm:$0xff]
        %v356 = vld [vmem:[%s5] sm:$0xff]
        %v357 = vld [vmem:[%s6] sm:$0xff]
        %v358 = vld [vmem:[%s331] sm:$0xff]
        %v359 = vld [vmem:[%s341] sm:$0xff]
        %v361 = vcombine.high %v359, %v359
        %vm362 = vcmask 31744
        %v364 = vsel %vm362, %v348, 0
        %v367 = vsel %vm362, %v349, 0
        %v370 = vsel %vm362, %v350, 0
        %v373 = vsel %vm362, %v351, 0
        %vm375 = vcmask 1043456
        %v376 = vsel %vm375, %v359, 0
        %v378 = vsel %vm375, %v361, 0
        %380 = vmatprep.subr.mxu0 %v378
        %381 = vmatpush1.msra.mxu0 %v376
        %382 = vmatprep.subr.mxu0 0.0
        %383 = vmatpush1.msra.mxu0 0.0
        %384 = vmatprep.subr.mxu0 0.0
        %385 = vmatpush1.msra.mxu0 0.0
        %386 = vmatprep.subr.mxu0 0.0
        %387 = vmatpush1.msra.mxu0 0.0
        %388 = vmatprep.subr.mxu0 0.0
        %389 = vmatpush1.msra.mxu0 0.0
        %390 = vmatprep.subr.mxu0 0.0
        %391 = vmatpush1.msra.mxu0 0.0
        %392 = vmatprep.subr.mxu0 0.0
        %393 = vmatpush1.msra.mxu0 0.0
        %394 = vmatprep.subr.mxu0 0.0
        %395 = vmatpush1.msra.mxu0 0.0
        %396 = vmatprep.subr.mxu0 0.0
        %397 = vmatpush1.msra.mxu0 0.0
        %398 = vmatprep.subr.mxu0 0.0
        %399 = vmatpush1.msra.mxu0 0.0
        %400 = vmatprep.subr.mxu0 0.0
        %401 = vmatpush1.msra.mxu0 0.0
        %402 = vmatprep.subr.mxu0 0.0
        %403 = vmatpush1.msra.mxu0 0.0
        %404 = vmatprep.subr.mxu0 0.0
        %405 = vmatpush1.msra.mxu0 0.0
        %406 = vmatprep.subr.mxu0 0.0
        %407 = vmatpush1.msra.mxu0 0.0
        %408 = vmatprep.subr.mxu0 0.0
        %409 = vmatpush1.msra.mxu0 0.0
        %410 = vmatprep.subr.mxu0 0.0
        %411 = vmatpush1.msra.mxu0 0.0
        %412 = vmatprep.subr.mxu0 0.0
        %413 = vmatpush1.msra.mxu0 0.0
        %414 = vmatprep.subr.mxu0 0.0
        %415 = vmatpush1.msra.mxu0 0.0
        %416 = vmatprep.subr.mxu0 0.0
        %417 = vmatpush1.msra.mxu0 0.0
        %418 = vmatprep.subr.mxu0 0.0
        %419 = vmatpush1.msra.mxu0 0.0
        %420 = vmatprep.subr.mxu0 0.0
        %421 = vmatpush1.msra.mxu0 0.0
        %422 = vmatprep.subr.mxu0 0.0
        %423 = vmatpush1.msra.mxu0 0.0
        %424 = vmatprep.subr.mxu0 0.0
        %425 = vmatpush1.msra.mxu0 0.0
        %426 = vmatprep.subr.mxu0 0.0
        %427 = vmatpush1.msra.mxu0 0.0
        %428 = vmatprep.subr.mxu0 0.0
        %429 = vmatpush1.msra.mxu0 0.0
        %430 = vmatprep.subr.mxu0 0.0
        %431 = vmatpush1.msra.mxu0 0.0
        %432 = vmatprep.subr.mxu0 0.0
        %433 = vmatpush1.msra.mxu0 0.0
        %434 = vmatprep.subr.mxu0 0.0
        %435 = vmatpush1.msra.mxu0 0.0
        %436 = vmatprep.subr.mxu0 0.0
        %437 = vmatpush1.msra.mxu0 0.0
        %438 = vmatprep.subr.mxu0 0.0
        %439 = vmatpush1.msra.mxu0 0.0
        %440 = vmatprep.subr.mxu0 0.0
        %441 = vmatpush1.msra.mxu0 0.0
        %442 = vmatprep.subr.mxu0 0.0
        %443 = vmatpush1.msra.mxu0 0.0
        %444 = vmatprep.mubr.f32.mxu0 0.0
        %445 = vmatmul.mubr.f32.gmra.mrb[0].mxu0 %v364
        %v446 = vpop.f32.mrb[0].mxu0
        %v447 = vadd.f32 0.0, %v446
        %v448 = vpop.f32.mrb[0].mxu0
        %v449 = vadd.f32 0.0, %v448
        %450 = vmatprep.mubr.f32.mxu0 0.0
        %451 = vmatmul.mubr.f32.gmra.mrb[0].mxu0 %v367
        %v452 = vpop.f32.mrb[0].mxu0
        %v453 = vadd.f32 0.0, %v452
        %v454 = vpop.f32.mrb[0].mxu0
        %v455 = vadd.f32 0.0, %v454
        %456 = vmatprep.mubr.f32.mxu0 0.0
        %457 = vmatmul.mubr.f32.gmra.mrb[0].mxu0 %v370
        %v458 = vpop.f32.mrb[0].mxu0
        %v459 = vadd.f32 0.0, %v458
        %v460 = vpop.f32.mrb[0].mxu0
        %v461 = vadd.f32 0.0, %v460
        %462 = vmatprep.mubr.f32.mxu0 0.0
        %463 = vmatmul.mubr.f32.gmra.mrb[0].mxu0 %v373
        %v464 = vpop.f32.mrb[0].mxu0
        %v465 = vadd.f32 0.0, %v464
        %v466 = vpop.f32.mrb[0].mxu0
        %v467 = vadd.f32 0.0, %v466
        %468 = vdwg.mxu0
        %v470 = vcombine.high %v358, %v358
        %v472 = vsel %vm362, %v344, 0
        %v475 = vsel %vm362, %v345, 0
        %v478 = vsel %vm362, %v346, 0
        %v481 = vsel %vm362, %v347, 0
        %v483 = vsel %vm375, %v358, 0
        %v485 = vsel %vm375, %v470, 0
        %487 = vmatprep.subr.mxu0 %v485
        %488 = vmatpush1.msra.mxu0 %v483
        %489 = vmatprep.subr.mxu0 0.0
        %490 = vmatpush1.msra.mxu0 0.0
        %491 = vmatprep.subr.mxu0 0.0
        %492 = vmatpush1.msra.mxu0 0.0
        %493 = vmatprep.subr.mxu0 0.0
        %494 = vmatpush1.msra.mxu0 0.0
        %495 = vmatprep.subr.mxu0 0.0
        %496 = vmatpush1.msra.mxu0 0.0
        %497 = vmatprep.subr.mxu0 0.0
        %498 = vmatpush1.msra.mxu0 0.0
        %499 = vmatprep.subr.mxu0 0.0
        %500 = vmatpush1.msra.mxu0 0.0
        %501 = vmatprep.subr.mxu0 0.0
        %502 = vmatpush1.msra.mxu0 0.0
        %503 = vmatprep.subr.mxu0 0.0
        %504 = vmatpush1.msra.mxu0 0.0
        %505 = vmatprep.subr.mxu0 0.0
        %506 = vmatpush1.msra.mxu0 0.0
        %507 = vmatprep.subr.mxu0 0.0
        %508 = vmatpush1.msra.mxu0 0.0
        %509 = vmatprep.subr.mxu0 0.0
        %510 = vmatpush1.msra.mxu0 0.0
        %511 = vmatprep.subr.mxu0 0.0
        %512 = vmatpush1.msra.mxu0 0.0
        %513 = vmatprep.subr.mxu0 0.0
        %514 = vmatpush1.msra.mxu0 0.0
        %515 = vmatprep.subr.mxu0 0.0
        %516 = vmatpush1.msra.mxu0 0.0
        %517 = vmatprep.subr.mxu0 0.0
        %518 = vmatpush1.msra.mxu0 0.0
        %519 = vmatprep.subr.mxu0 0.0
        %520 = vmatpush1.msra.mxu0 0.0
        %521 = vmatprep.subr.mxu0 0.0
        %522 = vmatpush1.msra.mxu0 0.0
        %523 = vmatprep.subr.mxu0 0.0
        %524 = vmatpush1.msra.mxu0 0.0
        %525 = vmatprep.subr.mxu0 0.0
        %526 = vmatpush1.msra.mxu0 0.0
        %527 = vmatprep.subr.mxu0 0.0
        %528 = vmatpush1.msra.mxu0 0.0
        %529 = vmatprep.subr.mxu0 0.0
        %530 = vmatpush1.msra.mxu0 0.0
        %531 = vmatprep.subr.mxu0 0.0
        %532 = vmatpush1.msra.mxu0 0.0
        %533 = vmatprep.subr.mxu0 0.0
        %534 = vmatpush1.msra.mxu0 0.0
        %535 = vmatprep.subr.mxu0 0.0
        %536 = vmatpush1.msra.mxu0 0.0
        %537 = vmatprep.subr.mxu0 0.0
        %538 = vmatpush1.msra.mxu0 0.0
        %539 = vmatprep.subr.mxu0 0.0
        %540 = vmatpush1.msra.mxu0 0.0
        %541 = vmatprep.subr.mxu0 0.0
        %542 = vmatpush1.msra.mxu0 0.0
        %543 = vmatprep.subr.mxu0 0.0
        %544 = vmatpush1.msra.mxu0 0.0
        %545 = vmatprep.subr.mxu0 0.0
        %546 = vmatpush1.msra.mxu0 0.0
        %547 = vmatprep.subr.mxu0 0.0
        %548 = vmatpush1.msra.mxu0 0.0
        %549 = vmatprep.subr.mxu0 0.0
        %550 = vmatpush1.msra.mxu0 0.0
        %551 = vmatprep.mubr.f32.mxu0 0.0
        %552 = vmatmul.mubr.f32.gmra.mrb[0].mxu0 %v472
        %v553 = vpop.f32.mrb[0].mxu0
        %v554 = vadd.f32 %v447, %v553
        %v555 = vpop.f32.mrb[0].mxu0
        %v556 = vadd.f32 %v449, %v555
        %557 = vmatprep.mubr.f32.mxu0 0.0
        %558 = vmatmul.mubr.f32.gmra.mrb[0].mxu0 %v475
        %v559 = vpop.f32.mrb[0].mxu0
        %v560 = vadd.f32 %v453, %v559
        %v561 = vpop.f32.mrb[0].mxu0
        %v562 = vadd.f32 %v455, %v561
        %563 = vmatprep.mubr.f32.mxu0 0.0
        %564 = vmatmul.mubr.f32.gmra.mrb[0].mxu0 %v478
        %v565 = vpop.f32.mrb[0].mxu0
        %v566 = vadd.f32 %v459, %v565
        %v567 = vpop.f32.mrb[0].mxu0
        %v568 = vadd.f32 %v461, %v567
        %569 = vmatprep.mubr.f32.mxu0 0.0
        %570 = vmatmul.mubr.f32.gmra.mrb[0].mxu0 %v481
        %v571 = vpop.f32.mrb[0].mxu0
        %v572 = vadd.f32 %v465, %v571
        %v573 = vpop.f32.mrb[0].mxu0
        %v574 = vadd.f32 %v467, %v573
        %575 = vdwg.mxu0
        %577 = vset.pattern.permute.xlu0 0
        %578 = vperm.xlu0 %577, %v352
        %v579 = vpop.permute.xlu0 %578
        %582 = vset.pattern.permute.xlu0 0
        %583 = vperm.xlu0 %582, %v353
        %v584 = vpop.permute.xlu0 %583
        %587 = vset.pattern.permute.xlu0 0
        %588 = vperm.xlu0 %587, %v354
        %v589 = vpop.permute.xlu0 %588
        %592 = vset.pattern.permute.xlu0 0
        %593 = vperm.xlu0 %592, %v355
        %v594 = vpop.permute.xlu0 %593
        %v596 = vadd.f32 %v554, %v579
        %v597 = vadd.f32 %v556, %v579
        %v598 = vadd.f32 %v560, %v584
        %v599 = vadd.f32 %v562, %v584
        %v600 = vadd.f32 %v566, %v589
        %v601 = vadd.f32 %v568, %v589
        %v602 = vadd.f32 %v572, %v594
        %v603 = vadd.f32 %v574, %v594
        %v604 = vxor.u32 %v596, 2147483648
        %v605 = vxor.u32 %v597, 2147483648
        %v606 = vxor.u32 %v598, 2147483648
        %v607 = vxor.u32 %v599, 2147483648
        %v608 = vxor.u32 %v600, 2147483648
        %v609 = vxor.u32 %v601, 2147483648
        %v610 = vxor.u32 %v602, 2147483648
        %v611 = vxor.u32 %v603, 2147483648
        %v612 = vmul.f32 %v604, 1.442695
        %v613 = vpow.pop %v612
        %v614 = vmul.f32 %v605, 1.442695
        %v615 = vpow.pop %v614
        %v616 = vmul.f32 %v606, 1.442695
        %v617 = vpow.pop %v616
        %v618 = vmul.f32 %v607, 1.442695
        %v619 = vpow.pop %v618
        %v620 = vmul.f32 %v608, 1.442695
        %v621 = vpow.pop %v620
        %v622 = vmul.f32 %v609, 1.442695
        %v623 = vpow.pop %v622
        %v624 = vmul.f32 %v610, 1.442695
        %v625 = vpow.pop %v624
        %v626 = vmul.f32 %v611, 1.442695
        %v627 = vpow.pop %v626
        %v628 = vadd.f32 %v613, 1.0
        %v629 = vadd.f32 %v615, 1.0
        %v630 = vadd.f32 %v617, 1.0
        %v631 = vadd.f32 %v619, 1.0
        %v632 = vadd.f32 %v621, 1.0
        %v633 = vadd.f32 %v623, 1.0
        %v634 = vadd.f32 %v625, 1.0
        %v635 = vadd.f32 %v627, 1.0
        %v636 = vrcp.pop %v628
        %v637 = vmul.f32 1.0, %v636
        %v638 = vrcp.pop %v629
        %v639 = vmul.f32 1.0, %v638
        %v640 = vrcp.pop %v630
        %v641 = vmul.f32 1.0, %v640
        %v642 = vrcp.pop %v631
        %v643 = vmul.f32 1.0, %v642
        %v644 = vrcp.pop %v632
        %v645 = vmul.f32 1.0, %v644
        %v646 = vrcp.pop %v633
        %v647 = vmul.f32 1.0, %v646
        %v648 = vrcp.pop %v634
        %v649 = vmul.f32 1.0, %v648
        %v650 = vrcp.pop %v635
        %v651 = vmul.f32 1.0, %v650
        %v652 = vmul.f32 %v596, %v637
        %v653 = vmul.f32 %v597, %v639
        %v654 = vmul.f32 %v598, %v641
        %v655 = vmul.f32 %v599, %v643
        %v656 = vmul.f32 %v600, %v645
        %v657 = vmul.f32 %v601, %v647
        %v658 = vmul.f32 %v602, %v649
        %v659 = vmul.f32 %v603, %v651
        %661 = vset.pattern.permute.xlu0 0
        %662 = vperm.xlu0 %661, %v357
        %v663 = vpop.permute.xlu0 %662
        %vm665 = vcmask 261120
        %v667 = vsel %vm665, %v356, 0
        %669 = vmatprep.subr.mxu0 %v653
        %670 = vmatpush1.msra.mxu0 %v652
        %671 = vmatprep.subr.mxu0 %v655
        %672 = vmatpush1.msra.mxu0 %v654
        %673 = vmatprep.subr.mxu0 %v657
        %674 = vmatpush1.msra.mxu0 %v656
        %675 = vmatprep.subr.mxu0 %v659
        %676 = vmatpush1.msra.mxu0 %v658
        %677 = vmatprep.subr.mxu0 0.0
        %678 = vmatpush1.msra.mxu0 0.0
        %679 = vmatprep.subr.mxu0 0.0
        %680 = vmatpush1.msra.mxu0 0.0
        %681 = vmatprep.subr.mxu0 0.0
        %682 = vmatpush1.msra.mxu0 0.0
        %683 = vmatprep.subr.mxu0 0.0
        %684 = vmatpush1.msra.mxu0 0.0
        %685 = vmatprep.subr.mxu0 0.0
        %686 = vmatpush1.msra.mxu0 0.0
        %687 = vmatprep.subr.mxu0 0.0
        %688 = vmatpush1.msra.mxu0 0.0
        %689 = vmatprep.subr.mxu0 0.0
        %690 = vmatpush1.msra.mxu0 0.0
        %691 = vmatprep.subr.mxu0 0.0
        %692 = vmatpush1.msra.mxu0 0.0
        %693 = vmatprep.subr.mxu0 0.0
        %694 = vmatpush1.msra.mxu0 0.0
        %695 = vmatprep.subr.mxu0 0.0
        %696 = vmatpush1.msra.mxu0 0.0
        %697 = vmatprep.subr.mxu0 0.0
        %698 = vmatpush1.msra.mxu0 0.0
        %699 = vmatprep.subr.mxu0 0.0
        %700 = vmatpush1.msra.mxu0 0.0
        %701 = vmatprep.subr.mxu0 0.0
        %702 = vmatpush1.msra.mxu0 0.0
        %703 = vmatprep.subr.mxu0 0.0
        %704 = vmatpush1.msra.mxu0 0.0
        %705 = vmatprep.subr.mxu0 0.0
        %706 = vmatpush1.msra.mxu0 0.0
        %707 = vmatprep.subr.mxu0 0.0
        %708 = vmatpush1.msra.mxu0 0.0
        %709 = vmatprep.subr.mxu0 0.0
        %710 = vmatpush1.msra.mxu0 0.0
        %711 = vmatprep.subr.mxu0 0.0
        %712 = vmatpush1.msra.mxu0 0.0
        %713 = vmatprep.subr.mxu0 0.0
        %714 = vmatpush1.msra.mxu0 0.0
        %715 = vmatprep.subr.mxu0 0.0
        %716 = vmatpush1.msra.mxu0 0.0
        %717 = vmatprep.subr.mxu0 0.0
        %718 = vmatpush1.msra.mxu0 0.0
        %719 = vmatprep.subr.mxu0 0.0
        %720 = vmatpush1.msra.mxu0 0.0
        %721 = vmatprep.subr.mxu0 0.0
        %722 = vmatpush1.msra.mxu0 0.0
        %723 = vmatprep.subr.mxu0 0.0
        %724 = vmatpush1.msra.mxu0 0.0
        %725 = vmatprep.subr.mxu0 0.0
        %726 = vmatpush1.msra.mxu0 0.0
        %727 = vmatprep.subr.mxu0 0.0
        %728 = vmatpush1.msra.mxu0 0.0
        %729 = vmatprep.subr.mxu0 0.0
        %730 = vmatpush1.msra.mxu0 0.0
        %731 = vmatprep.subr.mxu0 0.0
        %732 = vmatpush1.msra.mxu0 0.0
        %733 = vmatprep.mubr.f32.mxu0 0.0
        %734 = vmatmul.mubr.f32.gmra.mrb[0].mxu0 %v667
        %v735 = vpop.f32.mrb[0].mxu0
        %v736 = vadd.f32 %v663, %v735
        %v737 = vpop.f32.mrb[0].mxu0
        %v738 = vadd.f32 %v663, %v737
        %739 = vdwg.mxu0
        %740 = vst [vmem:[%s322] sm:$0xff] %v736
        %741 = vst [vmem:[%s322 + $0x8] sm:$0xff] %v738
        %s742 = sand.u32 %s204, 1
        %s743 = scalar_lea.sflag [#allocation3], %s742
        %s744 = sand.u32 %s204, 1
        %s745 = smul.addr %s744, 16
        %s746 = scalar_lea.vmem [#allocation2], %s745
        // Predicated region
        $region49: #{tpu_custom_call.1} parent=47 // pred_check
          %p747 = pneg %p214
        $region50: #{tpu_custom_call.1} parent=47 // pred_check_branch
          %749 = sbr.rel (%p747) target = $region52
        $region51: #{tpu_custom_call.1} parent=47 // pred_region
          %s750 = smul.u32 2, %s26
          %s752 = ssub.s32 256, 256
          %753 = vsyncadd %s743, %s752
          %s754 = smul.addr %s25, 2
          %s755 = sadd.s32 %s750, %s754
          %s756 = smul.addr %s755, 128
          %s757 = scalar_lea.hbm %s7, %s756
          %s759 = sshll.u32 %s746, 4
          %s760 = int_to_ptr.vmem [resolvable:$true] %s759
          %762 = dma.vmem_to_hbm [thread:$0]  %s760, 256, %s757, %s743
        $region52: #{tpu_custom_call.1} parent=47 // pred_fallthru
          _
      $region48: #{tpu_custom_call.1} parent=5 // pred_fallthru
        _
      %p763 = scmp.le.s32.totalorder 2, %s16
      // Predicated region
      $region53: #{tpu_custom_call.1} parent=5 // pred_check
        %p764 = pneg %p763
      $region54: #{tpu_custom_call.1} parent=5 // pred_check_branch
        %766 = sbr.rel (%p764) target = $region56
      $region55: #{tpu_custom_call.1} parent=5 // pred_region
        %s767 = ssub.s32 %s16, 2
        // Predicated region
        $region57: #{tpu_custom_call.1} parent=55 // pred_check
          %p768 = pneg %p220
        $region58: #{tpu_custom_call.1} parent=55 // pred_check_branch
          %770 = sbr.rel (%p768) target = $region60
        $region59: #{tpu_custom_call.1} parent=55 // pred_region
          %s771 = sand.u32 %s205, 1
          %s772 = scalar_lea.sflag [#allocation3], %s771
          %s773 = sand.u32 %s205, 1
          %s774 = smul.addr %s773, 16
          %s775 = scalar_lea.vmem [#allocation2], %s774
          %776 = dma.done %s772, 256
        $region60: #{tpu_custom_call.1} parent=55 // pred_fallthru
          _
      $region56: #{tpu_custom_call.1} parent=5 // pred_fallthru
        _
    $region6: #{tpu_custom_call.1} parent=1 // loop_footer
      %s20 = sadd.s32 1, %s16
    $region7: #{tpu_custom_call.1} parent=1 // loop_footer_branch
      %15 = sbr.rel target = $region3
    $region8: #{tpu_custom_call.1} parent=1 // loop_exit
      _
    %777 = vsyncpa [#allocation3], 1
    %s778 = scalar_lea.sflag [#allocation3], 1
    %779 = vsyncpa %s778, 1

</llo_original>
